<compile_context>
chip_gen: v7x
topology: tpu7x:2x2x1
jax: 0.10.0
libtpu: 0.0.40
codegen_flags: <defaults>
</compile_context>

<pallas_src>
import functools

import jax
import jax.numpy as jnp
from jax.experimental import pallas as pl
from jax.experimental.pallas import tpu as pltpu


def _round_up(x: int, m: int) -> int:
    return ((x + m - 1) // m) * m


def _mlp_kernel(*refs, n_layers, inv_gamma, mxu_dtype):
    """refs = (x_ref, w0, b0, w1, b1, ..., w_{L-1}, b_{L-1}, out_ref).

    First (n_layers - 1) layers: Linear + ReLU on (TB, width) activations.
    Last layer: (1, hidden) row contracted against h's feature axis -> (1, TB)
    lane-dense output block (batch on the 128-lane axis).
    """
    x_ref = refs[0]
    out_ref = refs[-1]
    wb = refs[1:-1]

    h = x_ref[...]  # (TB, d), mxu_dtype
    for i in range(n_layers - 1):
        w = wb[2 * i][...]        # (in, out), mxu_dtype (VMEM-resident)
        b = wb[2 * i + 1][...]    # (1, out), f32
        acc = jnp.dot(h.astype(mxu_dtype), w,
                      preferred_element_type=jnp.float32)
        h = jnp.maximum(acc + b, 0.0)  # bias-add + ReLU on the f32 accumulator

    wf = wb[2 * (n_layers - 1)][...]      # (1, hidden), mxu_dtype
    bf = wb[2 * (n_layers - 1) + 1][...]  # (1, 1), f32
    # (1, H) x (TB, H) contracted on H -> (1, TB): lane-dense result, same
    # trans-B dimension numbers as the q @ k^T pattern in flash attention.
    y = jax.lax.dot_general(
        wf, h.astype(mxu_dtype),
        dimension_numbers=(((1,), (1,)), ((), ())),
        preferred_element_type=jnp.float32,
    )
    out_ref[...] = (y + bf) * inv_gamma  # divide by gamma


def deepnn_forward(x, weights, biases, gamma=1.0, *, block_b=512,
                   mxu_dtype=jnp.float32):
    """Pallas forward pass matching DeepNN.forward.

    x:       (B, d) float32
    weights: list of (in, out) float32 arrays (hidden layers + final (hidden, 1))
    biases:  list of (out,)   float32 arrays
    returns: (B,) float32   -- matches torch .squeeze() / gamma
    """
    n_layers = len(weights)
    assert n_layers >= 1 and len(biases) == n_layers
    B, d = x.shape

    # ---- batch tiling: TB a multiple of 128 (lane-dense output), pad B up ----
    TB = min(int(block_b), _round_up(B, 128))
    TB = _round_up(TB, 128)
    B_pad = _round_up(B, TB)
    n_tiles = B_pad // TB

    x_p = x.astype(mxu_dtype)
    if B_pad != B:
        x_p = jnp.pad(x_p, ((0, B_pad - B), (0, 0)))

    # ---- params: hidden W as (in, out) in mxu_dtype; biases (1, out) in f32;
    #      final (hidden, 1) weight stored as a (1, hidden) row. -------------
    # (biases are tiny; each pads to an (8,128) VMEM tile — acceptable here.)
    args = [x_p]
    in_specs = [pl.BlockSpec((TB, d), lambda i: (i, 0))]
    for li, (w, b) in enumerate(zip(weights, biases)):
        if li == n_layers - 1:
            w_arr = jnp.reshape(w, (1, -1)).astype(mxu_dtype)   # (1, hidden)
        else:
            w_arr = w.astype(mxu_dtype)                          # (in, out)
        b_arr = b.reshape(1, -1).astype(jnp.float32)             # (1, out)
        args.append(w_arr)
        args.append(b_arr)
        in_specs.append(pl.BlockSpec(w_arr.shape, lambda i: (0, 0)))
        in_specs.append(pl.BlockSpec(b_arr.shape, lambda i: (0, 0)))

    kernel = functools.partial(
        _mlp_kernel,
        n_layers=n_layers,
        inv_gamma=1.0 / float(gamma),
        mxu_dtype=mxu_dtype,
    )

    # ---- cost estimate & VMEM budget -----------------------------------------
    flops = 2 * B_pad * sum(int(w.shape[0]) * int(w.shape[1]) for w in weights)
    param_bytes = sum(int(a.size) * a.dtype.itemsize for a in args[1:])
    bytes_accessed = (int(x_p.size) * x_p.dtype.itemsize
                      + param_bytes
                      + n_tiles * TB * 4)
    itemsize = jnp.dtype(mxu_dtype).itemsize
    max_w = max([d] + [int(w.shape[1]) for w in weights])
    need = (param_bytes
            + 2 * TB * d * itemsize    # double-buffered x tiles
            + 2 * TB * 4               # double-buffered out tiles
            + 4 * TB * max_w * 4)      # f32 activation working set (headroom)
    vmem_limit = int(min(max(2 * need, 32 << 20), 64 << 20))

    out = pl.pallas_call(
        kernel,
        out_shape=jax.ShapeDtypeStruct((n_tiles, TB), jnp.float32),
        grid=(n_tiles,),
        in_specs=in_specs,
        out_specs=pl.BlockSpec((1, TB), lambda i: (i, 0)),
        compiler_params=pltpu.CompilerParams(
            dimension_semantics=("parallel",),
            vmem_limit_bytes=vmem_limit,
        ),
        cost_estimate=pl.CostEstimate(
            flops=int(flops),
            transcendentals=0,
            bytes_accessed=int(bytes_accessed),
        ),
    )(*args)

    return out.reshape(-1)[:B]


def _xavier_uniform(key, fan_in, fan_out):
    # nn.init.xavier_uniform_ on a PyTorch (out, in) weight; we materialize the
    # transposed (in, out) layout directly (same distribution, same bound).
    bound = (6.0 / (fan_in + fan_out)) ** 0.5
    return jax.random.uniform(
        key, (fan_in, fan_out), dtype=jnp.float32, minval=-bound, maxval=bound
    )


def make_deepnn_params(key, d, hidden_size, depth):
    """Deterministic parameter init mirroring DeepNN.__init__ shapes."""
    weights, biases = [], []
    prev = d
    for _ in range(depth):
        key, sub = jax.random.split(key)
        weights.append(_xavier_uniform(sub, prev, hidden_size))
        biases.append(jnp.zeros((hidden_size,), jnp.float32))
        prev = hidden_size
    key, sub = jax.random.split(key)
    weights.append(_xavier_uniform(sub, prev, 1))
    biases.append(jnp.zeros((1,), jnp.float32))
    return weights, biases


def _reference_forward(x, weights, biases, gamma):
    h = x
    for w, b in zip(weights[:-1], biases[:-1]):
        h = jnp.maximum(h @ w + b, 0.0)
    y = h @ weights[-1] + biases[-1]
    return y.reshape(-1) / gamma


if __name__ == "__main__":
    # Small shapes consistent with the module: DeepNN(d=16, hidden_size=32, depth=3)
    d, hidden_size, depth = 16, 32, 3
    batch = 8
    gamma = 2.0

    key = jax.random.PRNGKey(0)
    key, kx = jax.random.split(key)
    x = jax.random.normal(kx, (batch, d), dtype=jnp.float32)

    weights, biases = make_deepnn_params(key, d, hidden_size, depth)
    ref = _reference_forward(x, weights, biases, gamma)

    # f32 MXU operands: exact semantics vs the reference.
    out = jax.block_until_ready(deepnn_forward(x, weights, biases, gamma=gamma))
    assert out.shape == (batch,)
    assert jnp.allclose(out, ref, atol=1e-5, rtol=1e-5)

    # bf16 MXU operands with f32 accumulation (v6e/v7x fast path): looser tol.
    out_bf16 = jax.block_until_ready(
        deepnn_forward(x, weights, biases, gamma=gamma, mxu_dtype=jnp.bfloat16)
    )
    assert out_bf16.shape == (batch,)
    assert jnp.allclose(out_bf16, ref, atol=5e-2, rtol=5e-2)

    print("KERNEL_OK")
</pallas_src>

<mosaic_0001>
module attributes {stable_mosaic.version = 11 : i64} {
  func.func @_mlp_kernel(%arg0: i32, %arg1: memref<128x16xf32, #tpu.memory_space<vmem>>, %arg2: memref<16x32xf32, #tpu.memory_space<vmem>>, %arg3: memref<1x32xf32, #tpu.memory_space<vmem>>, %arg4: memref<32x32xf32, #tpu.memory_space<vmem>>, %arg5: memref<1x32xf32, #tpu.memory_space<vmem>>, %arg6: memref<32x32xf32, #tpu.memory_space<vmem>>, %arg7: memref<1x32xf32, #tpu.memory_space<vmem>>, %arg8: memref<1x32xf32, #tpu.memory_space<vmem>>, %arg9: memref<1x1xf32, #tpu.memory_space<vmem>>, %arg10: memref<1x128xf32, #tpu.memory_space<vmem>>) attributes {dimension_semantics = [#tpu.dimension_semantics<parallel>], iteration_bounds = array<i64: 1>, scalar_prefetch = 0 : i64, scratch_operands = 0 : i64, tpu.core_type = #tpu.core_type<tc>, window_params = [{transform_indices = @transform_0, window_bounds = array<i64: 128, 16>}, {pipeline_mode = #tpu.pipeline_mode<synchronous>, transform_indices = @transform_1, window_bounds = array<i64: 16, 32>}, {pipeline_mode = #tpu.pipeline_mode<synchronous>, transform_indices = @transform_2, window_bounds = array<i64: 1, 32>}, {pipeline_mode = #tpu.pipeline_mode<synchronous>, transform_indices = @transform_3, window_bounds = array<i64: 32, 32>}, {pipeline_mode = #tpu.pipeline_mode<synchronous>, transform_indices = @transform_4, window_bounds = array<i64: 1, 32>}, {pipeline_mode = #tpu.pipeline_mode<synchronous>, transform_indices = @transform_5, window_bounds = array<i64: 32, 32>}, {pipeline_mode = #tpu.pipeline_mode<synchronous>, transform_indices = @transform_6, window_bounds = array<i64: 1, 32>}, {pipeline_mode = #tpu.pipeline_mode<synchronous>, transform_indices = @transform_7, window_bounds = array<i64: 1, 32>}, {pipeline_mode = #tpu.pipeline_mode<synchronous>, transform_indices = @transform_8, window_bounds = array<i64: 1, 1>}, {transform_indices = @transform_9, window_bounds = array<i64: 1, 128>}]} {
    %c0 = arith.constant 0 : index
    %c0_0 = arith.constant 0 : index
    %0 = vector.load %arg1[%c0, %c0_0] : memref<128x16xf32, #tpu.memory_space<vmem>>, vector<128x16xf32>
    %c0_1 = arith.constant 0 : index
    %c0_2 = arith.constant 0 : index
    %1 = vector.load %arg2[%c0_1, %c0_2] : memref<16x32xf32, #tpu.memory_space<vmem>>, vector<16x32xf32>
    %c0_3 = arith.constant 0 : index
    %c0_4 = arith.constant 0 : index
    %2 = vector.load %arg3[%c0_3, %c0_4] : memref<1x32xf32, #tpu.memory_space<vmem>>, vector<1x32xf32>
    %cst = arith.constant dense<0.000000e+00> : vector<128x32xf32>
    %3 = tpu.matmul %0, %1, %cst {dimension_numbers = #tpu.dot_dimension_numbers<[1], [0], [0], [1], [0, 0, 1, 1], [], []>} : vector<128x16xf32>, vector<16x32xf32>, vector<128x32xf32> -> vector<128x32xf32>
    %4 = vector.broadcast %2 : vector<1x32xf32> to vector<128x32xf32>
    %5 = arith.addf %3, %4 : vector<128x32xf32>
    %cst_5 = arith.constant 0.000000e+00 : f32
    %6 = vector.broadcast %cst_5 : f32 to vector<128x32xf32>
    %7 = arith.maximumf %5, %6 : vector<128x32xf32>
    %c0_6 = arith.constant 0 : index
    %c0_7 = arith.constant 0 : index
    %8 = vector.load %arg4[%c0_6, %c0_7] : memref<32x32xf32, #tpu.memory_space<vmem>>, vector<32x32xf32>
    %c0_8 = arith.constant 0 : index
    %c0_9 = arith.constant 0 : index
    %9 = vector.load %arg5[%c0_8, %c0_9] : memref<1x32xf32, #tpu.memory_space<vmem>>, vector<1x32xf32>
    %cst_10 = arith.constant dense<0.000000e+00> : vector<128x32xf32>
    %10 = tpu.matmul %7, %8, %cst_10 {dimension_numbers = #tpu.dot_dimension_numbers<[1], [0], [0], [1], [0, 0, 1, 1], [], []>} : vector<128x32xf32>, vector<32x32xf32>, vector<128x32xf32> -> vector<128x32xf32>
    %11 = vector.broadcast %9 : vector<1x32xf32> to vector<128x32xf32>
    %12 = arith.addf %10, %11 : vector<128x32xf32>
    %cst_11 = arith.constant 0.000000e+00 : f32
    %13 = vector.broadcast %cst_11 : f32 to vector<128x32xf32>
    %14 = arith.maximumf %12, %13 : vector<128x32xf32>
    %c0_12 = arith.constant 0 : index
    %c0_13 = arith.constant 0 : index
    %15 = vector.load %arg6[%c0_12, %c0_13] : memref<32x32xf32, #tpu.memory_space<vmem>>, vector<32x32xf32>
    %c0_14 = arith.constant 0 : index
    %c0_15 = arith.constant 0 : index
    %16 = vector.load %arg7[%c0_14, %c0_15] : memref<1x32xf32, #tpu.memory_space<vmem>>, vector<1x32xf32>
    %cst_16 = arith.constant dense<0.000000e+00> : vector<128x32xf32>
    %17 = tpu.matmul %14, %15, %cst_16 {dimension_numbers = #tpu.dot_dimension_numbers<[1], [0], [0], [1], [0, 0, 1, 1], [], []>} : vector<128x32xf32>, vector<32x32xf32>, vector<128x32xf32> -> vector<128x32xf32>
    %18 = vector.broadcast %16 : vector<1x32xf32> to vector<128x32xf32>
    %19 = arith.addf %17, %18 : vector<128x32xf32>
    %cst_17 = arith.constant 0.000000e+00 : f32
    %20 = vector.broadcast %cst_17 : f32 to vector<128x32xf32>
    %21 = arith.maximumf %19, %20 : vector<128x32xf32>
    %c0_18 = arith.constant 0 : index
    %c0_19 = arith.constant 0 : index
    %22 = vector.load %arg8[%c0_18, %c0_19] : memref<1x32xf32, #tpu.memory_space<vmem>>, vector<1x32xf32>
    %c0_20 = arith.constant 0 : index
    %c0_21 = arith.constant 0 : index
    %23 = vector.load %arg9[%c0_20, %c0_21] : memref<1x1xf32, #tpu.memory_space<vmem>>, vector<1x1xf32>
    %cst_22 = arith.constant dense<0.000000e+00> : vector<1x128xf32>
    %24 = tpu.matmul %22, %21, %cst_22 {dimension_numbers = #tpu.dot_dimension_numbers<[1], [1], [0], [0], [0, 0, 1, 0], [], []>} : vector<1x32xf32>, vector<128x32xf32>, vector<1x128xf32> -> vector<1x128xf32>
    %25 = vector.broadcast %23 : vector<1x1xf32> to vector<1x128xf32>
    %26 = arith.addf %24, %25 : vector<1x128xf32>
    %cst_23 = arith.constant 5.000000e-01 : f32
    %27 = vector.broadcast %cst_23 : f32 to vector<1x128xf32>
    %28 = arith.mulf %26, %27 : vector<1x128xf32>
    %c0_24 = arith.constant 0 : index
    %c0_25 = arith.constant 0 : index
    %29 = vector.load %arg10[%c0_24, %c0_25] : memref<1x128xf32, #tpu.memory_space<vmem>>, vector<1x128xf32>
    tpu.vector_store %arg10[%c0_24, %c0_25], %28 {strides = array<i32>} : memref<1x128xf32, #tpu.memory_space<vmem>>, vector<1x128xf32>,
    return
  }
  func.func @transform_0(%arg0: i32) -> (i32, i32) {
    %c0_i32 = arith.constant 0 : i32
    %c0_i32_0 = arith.constant 0 : i32
    return %arg0, %c0_i32 : i32, i32
  }
  func.func @transform_1(%arg0: i32) -> (i32, i32) {
    %c0_i32 = arith.constant 0 : i32
    %c0_i32_0 = arith.constant 0 : i32
    %c0_i32_1 = arith.constant 0 : i32
    return %c0_i32, %c0_i32_0 : i32, i32
  }
  func.func @transform_2(%arg0: i32) -> (i32, i32) {
    %c0_i32 = arith.constant 0 : i32
    %c0_i32_0 = arith.constant 0 : i32
    %c0_i32_1 = arith.constant 0 : i32
    return %c0_i32, %c0_i32_0 : i32, i32
  }
  func.func @transform_3(%arg0: i32) -> (i32, i32) {
    %c0_i32 = arith.constant 0 : i32
    %c0_i32_0 = arith.constant 0 : i32
    %c0_i32_1 = arith.constant 0 : i32
    return %c0_i32, %c0_i32_0 : i32, i32
  }
  func.func @transform_4(%arg0: i32) -> (i32, i32) {
    %c0_i32 = arith.constant 0 : i32
    %c0_i32_0 = arith.constant 0 : i32
    %c0_i32_1 = arith.constant 0 : i32
    return %c0_i32, %c0_i32_0 : i32, i32
  }
  func.func @transform_5(%arg0: i32) -> (i32, i32) {
    %c0_i32 = arith.constant 0 : i32
    %c0_i32_0 = arith.constant 0 : i32
    %c0_i32_1 = arith.constant 0 : i32
    return %c0_i32, %c0_i32_0 : i32, i32
  }
  func.func @transform_6(%arg0: i32) -> (i32, i32) {
    %c0_i32 = arith.constant 0 : i32
    %c0_i32_0 = arith.constant 0 : i32
    %c0_i32_1 = arith.constant 0 : i32
    return %c0_i32, %c0_i32_0 : i32, i32
  }
  func.func @transform_7(%arg0: i32) -> (i32, i32) {
    %c0_i32 = arith.constant 0 : i32
    %c0_i32_0 = arith.constant 0 : i32
    %c0_i32_1 = arith.constant 0 : i32
    return %c0_i32, %c0_i32_0 : i32, i32
  }
  func.func @transform_8(%arg0: i32) -> (i32, i32) {
    %c0_i32 = arith.constant 0 : i32
    %c0_i32_0 = arith.constant 0 : i32
    %c0_i32_1 = arith.constant 0 : i32
    return %c0_i32, %c0_i32_0 : i32, i32
  }
  func.func @transform_9(%arg0: i32) -> (i32, i32) {
    %c0_i32 = arith.constant 0 : i32
    %c0_i32_0 = arith.constant 0 : i32
    return %arg0, %c0_i32 : i32, i32
  }
}

</mosaic_0001>

<llo_original>
// kernel: tpu_custom_call.1
$region0: #{tpu_custom_call.1}
  #allocation0 [shape = 'u32[]', space=smem, size = 0x4, offset = 0x4, fixed_abs, tag = 'smem constant byte address 0x4 - core index']
  #allocation1 [shape = 'u32[144,128]{1,0:T(1,128)}', space=vmem, size = 0x12000, scoped, tag = 'internal scratch']
  #allocation2 [shape = 'f32[1,1]{1,0:T(1,128)S(1)}', space=vmem, size = 0x200, scoped, tag = 'scoped memory for tpu_custom_call.1']
  %s0 = inlined_call_operand.vmem [shape: f32[128,16], index: 0, kind: input, shape index: {}]
  %s1 = inlined_call_operand.vmem [shape: f32[16,32], index: 1, kind: input, shape index: {}]
  %s2 = inlined_call_operand.vmem [shape: f32[1,32], index: 2, kind: input, shape index: {}]
  %s3 = inlined_call_operand.vmem [shape: f32[32,32], index: 3, kind: input, shape index: {}]
  %s4 = inlined_call_operand.vmem [shape: f32[1,32], index: 4, kind: input, shape index: {}]
  %s5 = inlined_call_operand.vmem [shape: f32[32,32], index: 5, kind: input, shape index: {}]
  %s6 = inlined_call_operand.vmem [shape: f32[1,32], index: 6, kind: input, shape index: {}]
  %s7 = inlined_call_operand.vmem [shape: f32[1,32], index: 7, kind: input, shape index: {}]
  %s8 = inlined_call_operand.<no memory space> [shape: f32[1,1], index: 8, kind: input, shape index: {}]
  %s9 = inlined_call_operand.hbm [shape: f32[1,128], index: 9, kind: output, shape index: {}]
  %s10 = sld [smem:[#allocation0]]
  $region46: #{tpu_custom_call.1} parent=0
    _
  %s12 = ssub.s32 1, %s10
  %s13 = scalar_select 0, %s12, %s10
  %v14 = vstv %s8
  %15 = vst [vmem:[#allocation2] sm:$0x1] %v14
  $region1: #{tpu_custom_call.1} parent=0
    #allocation3 [shape = 'u8[512]{0}', space=vmem, size = 0x400, scoped, tag = 'output window, operand 0, single buffered']
    #allocation4 [shape = 's32[1]{0}', space=sflag, size = 0x4, scoped, tag = 'scoped memory for tpu_custom_call.1']
    %16 = vsyncpa [#allocation4], 0
    // Predicated region
    $region2: #{tpu_custom_call.1} parent=1 // pred_check
      _
    $region3: #{tpu_custom_call.1} parent=1 // pred_check_branch
      %18 = sbr.rel (0) target = $region5
    $region4: #{tpu_custom_call.1} parent=1 // pred_region
      _
    $region5: #{tpu_custom_call.1} parent=1 // pred_fallthru
      _
    // Predicated region
    $region6: #{tpu_custom_call.1} parent=1 // pred_check
      _
    $region7: #{tpu_custom_call.1} parent=1 // pred_check_branch
      %20 = sbr.rel (0) target = $region9
    $region8: #{tpu_custom_call.1} parent=1 // pred_region
      _
    $region9: #{tpu_custom_call.1} parent=1 // pred_fallthru
      _
    // Predicated region
    $region10: #{tpu_custom_call.1} parent=1 // pred_check
      _
    $region11: #{tpu_custom_call.1} parent=1 // pred_check_branch
      %22 = sbr.rel (0) target = $region13
    $region12: #{tpu_custom_call.1} parent=1 // pred_region
      _
    $region13: #{tpu_custom_call.1} parent=1 // pred_fallthru
      _
    // Predicated region
    $region14: #{tpu_custom_call.1} parent=1 // pred_check
      _
    $region15: #{tpu_custom_call.1} parent=1 // pred_check_branch
      %24 = sbr.rel (0) target = $region17
    $region16: #{tpu_custom_call.1} parent=1 // pred_region
      _
    $region17: #{tpu_custom_call.1} parent=1 // pred_fallthru
      _
    // Predicated region
    $region18: #{tpu_custom_call.1} parent=1 // pred_check
      _
    $region19: #{tpu_custom_call.1} parent=1 // pred_check_branch
      %26 = sbr.rel (0) target = $region21
    $region20: #{tpu_custom_call.1} parent=1 // pred_region
      _
    $region21: #{tpu_custom_call.1} parent=1 // pred_fallthru
      _
    // Predicated region
    $region22: #{tpu_custom_call.1} parent=1 // pred_check
      _
    $region23: #{tpu_custom_call.1} parent=1 // pred_check_branch
      %28 = sbr.rel (0) target = $region25
    $region24: #{tpu_custom_call.1} parent=1 // pred_region
      _
    $region25: #{tpu_custom_call.1} parent=1 // pred_fallthru
      _
    // Predicated region
    $region26: #{tpu_custom_call.1} parent=1 // pred_check
      _
    $region27: #{tpu_custom_call.1} parent=1 // pred_check_branch
      %30 = sbr.rel (0) target = $region29
    $region28: #{tpu_custom_call.1} parent=1 // pred_region
      _
    $region29: #{tpu_custom_call.1} parent=1 // pred_fallthru
      _
    // Predicated region
    $region30: #{tpu_custom_call.1} parent=1 // pred_check
      _
    $region31: #{tpu_custom_call.1} parent=1 // pred_check_branch
      %32 = sbr.rel (0) target = $region33
    $region32: #{tpu_custom_call.1} parent=1 // pred_region
      _
    $region33: #{tpu_custom_call.1} parent=1 // pred_fallthru
      _
    // Predicated region
    $region34: #{tpu_custom_call.1} parent=1 // pred_check
      _
    $region35: #{tpu_custom_call.1} parent=1 // pred_check_branch
      %34 = sbr.rel (0) target = $region37
    $region36: #{tpu_custom_call.1} parent=1 // pred_region
      _
    $region37: #{tpu_custom_call.1} parent=1 // pred_fallthru
      _
    %v35 = vld [vmem:[%s0] sm:$0xff]
    %v36 = vld [vmem:[%s0 + $0x8] sm:$0xff]
    %v37 = vld [vmem:[%s0 + $0x10] sm:$0xff]
    %v38 = vld [vmem:[%s0 + $0x18] sm:$0xff]
    %v39 = vld [vmem:[%s0 + $0x20] sm:$0xff]
    %v40 = vld [vmem:[%s0 + $0x28] sm:$0xff]
    %v41 = vld [vmem:[%s0 + $0x30] sm:$0xff]
    %v42 = vld [vmem:[%s0 + $0x38] sm:$0xff]
    %v43 = vld [vmem:[%s0 + $0x40] sm:$0xff]
    %v44 = vld [vmem:[%s0 + $0x48] sm:$0xff]
    %v45 = vld [vmem:[%s0 + $0x50] sm:$0xff]
    %v46 = vld [vmem:[%s0 + $0x58] sm:$0xff]
    %v47 = vld [vmem:[%s0 + $0x60] sm:$0xff]
    %v48 = vld [vmem:[%s0 + $0x68] sm:$0xff]
    %v49 = vld [vmem:[%s0 + $0x70] sm:$0xff]
    %v50 = vld [vmem:[%s0 + $0x78] sm:$0xff]
    %v51 = vld [vmem:[%s1] sm:$0xff]
    %v52 = vld [vmem:[%s1 + $0x8] sm:$0xff]
    %v53 = vld [vmem:[%s2] sm:$0x1]
    %v55 = vlaneseq
    %v56 = vshrl.u32 %v55, 7
    %v57 = vsub.s32 0, %v56
    %v58 = vrot.slane %v53, %v57
    %vm60 = vcmask 130048
    %v62 = vsel %vm60, %v35, 0
    %v65 = vsel %vm60, %v36, 0
    %v68 = vsel %vm60, %v37, 0
    %v71 = vsel %vm60, %v38, 0
    %v74 = vsel %vm60, %v39, 0
    %v77 = vsel %vm60, %v40, 0
    %v80 = vsel %vm60, %v41, 0
    %v83 = vsel %vm60, %v42, 0
    %v86 = vsel %vm60, %v43, 0
    %v89 = vsel %vm60, %v44, 0
    %v92 = vsel %vm60, %v45, 0
    %v95 = vsel %vm60, %v46, 0
    %v98 = vsel %vm60, %v47, 0
    %v101 = vsel %vm60, %v48, 0
    %v104 = vsel %vm60, %v49, 0
    %v107 = vsel %vm60, %v50, 0
    %109 = vmatprep.subr.mxu0 0.0
    %110 = vmatpush1.msra.mxu0 %v51
    %111 = vmatprep.subr.mxu0 0.0
    %112 = vmatpush1.msra.mxu0 %v52
    %113 = vmatprep.subr.mxu0 0.0
    %114 = vmatpush1.msra.mxu0 0.0
    %115 = vmatprep.subr.mxu0 0.0
    %116 = vmatpush1.msra.mxu0 0.0
    %117 = vmatprep.subr.mxu0 0.0
    %118 = vmatpush1.msra.mxu0 0.0
    %119 = vmatprep.subr.mxu0 0.0
    %120 = vmatpush1.msra.mxu0 0.0
    %121 = vmatprep.subr.mxu0 0.0
    %122 = vmatpush1.msra.mxu0 0.0
    %123 = vmatprep.subr.mxu0 0.0
    %124 = vmatpush1.msra.mxu0 0.0
    %125 = vmatprep.subr.mxu0 0.0
    %126 = vmatpush1.msra.mxu0 0.0
    %127 = vmatprep.subr.mxu0 0.0
    %128 = vmatpush1.msra.mxu0 0.0
    %129 = vmatprep.subr.mxu0 0.0
    %130 = vmatpush1.msra.mxu0 0.0
    %131 = vmatprep.subr.mxu0 0.0
    %132 = vmatpush1.msra.mxu0 0.0
    %133 = vmatprep.subr.mxu0 0.0
    %134 = vmatpush1.msra.mxu0 0.0
    %135 = vmatprep.subr.mxu0 0.0
    %136 = vmatpush1.msra.mxu0 0.0
    %137 = vmatprep.subr.mxu0 0.0
    %138 = vmatpush1.msra.mxu0 0.0
    %139 = vmatprep.subr.mxu0 0.0
    %140 = vmatpush1.msra.mxu0 0.0
    %141 = vmatprep.subr.mxu0 0.0
    %142 = vmatpush1.msra.mxu0 0.0
    %143 = vmatprep.subr.mxu0 0.0
    %144 = vmatpush1.msra.mxu0 0.0
    %145 = vmatprep.subr.mxu0 0.0
    %146 = vmatpush1.msra.mxu0 0.0
    %147 = vmatprep.subr.mxu0 0.0
    %148 = vmatpush1.msra.mxu0 0.0
    %149 = vmatprep.subr.mxu0 0.0
    %150 = vmatpush1.msra.mxu0 0.0
    %151 = vmatprep.subr.mxu0 0.0
    %152 = vmatpush1.msra.mxu0 0.0
    %153 = vmatprep.subr.mxu0 0.0
    %154 = vmatpush1.msra.mxu0 0.0
    %155 = vmatprep.subr.mxu0 0.0
    %156 = vmatpush1.msra.mxu0 0.0
    %157 = vmatprep.subr.mxu0 0.0
    %158 = vmatpush1.msra.mxu0 0.0
    %159 = vmatprep.subr.mxu0 0.0
    %160 = vmatpush1.msra.mxu0 0.0
    %161 = vmatprep.subr.mxu0 0.0
    %162 = vmatpush1.msra.mxu0 0.0
    %163 = vmatprep.subr.mxu0 0.0
    %164 = vmatpush1.msra.mxu0 0.0
    %165 = vmatprep.subr.mxu0 0.0
    %166 = vmatpush1.msra.mxu0 0.0
    %167 = vmatprep.subr.mxu0 0.0
    %168 = vmatpush1.msra.mxu0 0.0
    %169 = vmatprep.subr.mxu0 0.0
    %170 = vmatpush1.msra.mxu0 0.0
    %171 = vmatprep.subr.mxu0 0.0
    %172 = vmatpush1.msra.mxu0 0.0
    %173 = vmatprep.mubr.f32.mxu0 0.0
    %174 = vmatmul.mubr.f32.gmra.mrb[0].mxu0 %v62
    %v175 = vpop.f32.mrb[0].mxu0
    %v176 = vadd.f32 %v58, %v175
    %v177 = vpop.f32.mrb[0].mxu0
    %178 = vmatprep.mubr.f32.mxu0 0.0
    %179 = vmatmul.mubr.f32.gmra.mrb[0].mxu0 %v65
    %v180 = vpop.f32.mrb[0].mxu0
    %v181 = vadd.f32 %v58, %v180
    %v182 = vpop.f32.mrb[0].mxu0
    %183 = vmatprep.mubr.f32.mxu0 0.0
    %184 = vmatmul.mubr.f32.gmra.mrb[0].mxu0 %v68
    %v185 = vpop.f32.mrb[0].mxu0
    %v186 = vadd.f32 %v58, %v185
    %v187 = vpop.f32.mrb[0].mxu0
    %188 = vmatprep.mubr.f32.mxu0 0.0
    %189 = vmatmul.mubr.f32.gmra.mrb[0].mxu0 %v71
    %v190 = vpop.f32.mrb[0].mxu0
    %v191 = vadd.f32 %v58, %v190
    %v192 = vpop.f32.mrb[0].mxu0
    %193 = vmatprep.mubr.f32.mxu0 0.0
    %194 = vmatmul.mubr.f32.gmra.mrb[0].mxu0 %v74
    %v195 = vpop.f32.mrb[0].mxu0
    %v196 = vadd.f32 %v58, %v195
    %v197 = vpop.f32.mrb[0].mxu0
    %198 = vmatprep.mubr.f32.mxu0 0.0
    %199 = vmatmul.mubr.f32.gmra.mrb[0].mxu0 %v77
    %v200 = vpop.f32.mrb[0].mxu0
    %v201 = vadd.f32 %v58, %v200
    %v202 = vpop.f32.mrb[0].mxu0
    %203 = vmatprep.mubr.f32.mxu0 0.0
    %204 = vmatmul.mubr.f32.gmra.mrb[0].mxu0 %v80
    %v205 = vpop.f32.mrb[0].mxu0
    %v206 = vadd.f32 %v58, %v205
    %v207 = vpop.f32.mrb[0].mxu0
    %208 = vmatprep.mubr.f32.mxu0 0.0
    %209 = vmatmul.mubr.f32.gmra.mrb[0].mxu0 %v83
    %v210 = vpop.f32.mrb[0].mxu0
    %v211 = vadd.f32 %v58, %v210
    %v212 = vpop.f32.mrb[0].mxu0
    %213 = vmatprep.mubr.f32.mxu0 0.0
    %214 = vmatmul.mubr.f32.gmra.mrb[0].mxu0 %v86
    %v215 = vpop.f32.mrb[0].mxu0
    %v216 = vadd.f32 %v58, %v215
    %v217 = vpop.f32.mrb[0].mxu0
    %218 = vmatprep.mubr.f32.mxu0 0.0
    %219 = vmatmul.mubr.f32.gmra.mrb[0].mxu0 %v89
    %v220 = vpop.f32.mrb[0].mxu0
    %v221 = vadd.f32 %v58, %v220
    %v222 = vpop.f32.mrb[0].mxu0
    %223 = vmatprep.mubr.f32.mxu0 0.0
    %224 = vmatmul.mubr.f32.gmra.mrb[0].mxu0 %v92
    %v225 = vpop.f32.mrb[0].mxu0
    %v226 = vadd.f32 %v58, %v225
    %v227 = vpop.f32.mrb[0].mxu0
    %228 = vmatprep.mubr.f32.mxu0 0.0
    %229 = vmatmul.mubr.f32.gmra.mrb[0].mxu0 %v95
    %v230 = vpop.f32.mrb[0].mxu0
    %v231 = vadd.f32 %v58, %v230
    %v232 = vpop.f32.mrb[0].mxu0
    %233 = vmatprep.mubr.f32.mxu0 0.0
    %234 = vmatmul.mubr.f32.gmra.mrb[0].mxu0 %v98
    %v235 = vpop.f32.mrb[0].mxu0
    %v236 = vadd.f32 %v58, %v235
    %v237 = vpop.f32.mrb[0].mxu0
    %238 = vmatprep.mubr.f32.mxu0 0.0
    %239 = vmatmul.mubr.f32.gmra.mrb[0].mxu0 %v101
    %v240 = vpop.f32.mrb[0].mxu0
    %v241 = vadd.f32 %v58, %v240
    %v242 = vpop.f32.mrb[0].mxu0
    %243 = vmatprep.mubr.f32.mxu0 0.0
    %244 = vmatmul.mubr.f32.gmra.mrb[0].mxu0 %v104
    %v245 = vpop.f32.mrb[0].mxu0
    %v246 = vadd.f32 %v58, %v245
    %v247 = vpop.f32.mrb[0].mxu0
    %248 = vmatprep.mubr.f32.mxu0 0.0
    %249 = vmatmul.mubr.f32.gmra.mrb[0].mxu0 %v107
    %v250 = vpop.f32.mrb[0].mxu0
    %v251 = vadd.f32 %v58, %v250
    %v252 = vpop.f32.mrb[0].mxu0
    %253 = vdwg.mxu0
    %v254 = vmax.f32 %v176, 0.0
    %v255 = vmax.f32 %v181, 0.0
    %v256 = vmax.f32 %v186, 0.0
    %v257 = vmax.f32 %v191, 0.0
    %v258 = vmax.f32 %v196, 0.0
    %v259 = vmax.f32 %v201, 0.0
    %v260 = vmax.f32 %v206, 0.0
    %v261 = vmax.f32 %v211, 0.0
    %v262 = vmax.f32 %v216, 0.0
    %v263 = vmax.f32 %v221, 0.0
    %v264 = vmax.f32 %v226, 0.0
    %v265 = vmax.f32 %v231, 0.0
    %v266 = vmax.f32 %v236, 0.0
    %v267 = vmax.f32 %v241, 0.0
    %v268 = vmax.f32 %v246, 0.0
    %v269 = vmax.f32 %v251, 0.0
    %v270 = vld [vmem:[%s3] sm:$0xff]
    %v271 = vld [vmem:[%s3 + $0x8] sm:$0xff]
    %v272 = vld [vmem:[%s3 + $0x10] sm:$0xff]
    %v273 = vld [vmem:[%s3 + $0x18] sm:$0xff]
    %v274 = vld [vmem:[%s4] sm:$0x1]
    %v276 = vlaneseq
    %v277 = vshrl.u32 %v276, 7
    %v278 = vsub.s32 0, %v277
    %v279 = vrot.slane %v274, %v278
    %vm281 = vcmask 261120
    %v283 = vsel %vm281, %v254, 0
    %v286 = vsel %vm281, %v255, 0
    %v289 = vsel %vm281, %v256, 0
    %v292 = vsel %vm281, %v257, 0
    %v295 = vsel %vm281, %v258, 0
    %v298 = vsel %vm281, %v259, 0
    %v301 = vsel %vm281, %v260, 0
    %v304 = vsel %vm281, %v261, 0
    %v307 = vsel %vm281, %v262, 0
    %v310 = vsel %vm281, %v263, 0
    %v313 = vsel %vm281, %v264, 0
    %v316 = vsel %vm281, %v265, 0
    %v319 = vsel %vm281, %v266, 0
    %v322 = vsel %vm281, %v267, 0
    %v325 = vsel %vm281, %v268, 0
    %v328 = vsel %vm281, %v269, 0
    %330 = vmatprep.subr.mxu0 0.0
    %331 = vmatpush1.msra.mxu0 %v270
    %332 = vmatprep.subr.mxu0 0.0
    %333 = vmatpush1.msra.mxu0 %v271
    %334 = vmatprep.subr.mxu0 0.0
    %335 = vmatpush1.msra.mxu0 %v272
    %336 = vmatprep.subr.mxu0 0.0
    %337 = vmatpush1.msra.mxu0 %v273
    %338 = vmatprep.subr.mxu0 0.0
    %339 = vmatpush1.msra.mxu0 0.0
    %340 = vmatprep.subr.mxu0 0.0
    %341 = vmatpush1.msra.mxu0 0.0
    %342 = vmatprep.subr.mxu0 0.0
    %343 = vmatpush1.msra.mxu0 0.0
    %344 = vmatprep.subr.mxu0 0.0
    %345 = vmatpush1.msra.mxu0 0.0
    %346 = vmatprep.subr.mxu0 0.0
    %347 = vmatpush1.msra.mxu0 0.0
    %348 = vmatprep.subr.mxu0 0.0
    %349 = vmatpush1.msra.mxu0 0.0
    %350 = vmatprep.subr.mxu0 0.0
    %351 = vmatpush1.msra.mxu0 0.0
    %352 = vmatprep.subr.mxu0 0.0
    %353 = vmatpush1.msra.mxu0 0.0
    %354 = vmatprep.subr.mxu0 0.0
    %355 = vmatpush1.msra.mxu0 0.0
    %356 = vmatprep.subr.mxu0 0.0
    %357 = vmatpush1.msra.mxu0 0.0
    %358 = vmatprep.subr.mxu0 0.0
    %359 = vmatpush1.msra.mxu0 0.0
    %360 = vmatprep.subr.mxu0 0.0
    %361 = vmatpush1.msra.mxu0 0.0
    %362 = vmatprep.subr.mxu0 0.0
    %363 = vmatpush1.msra.mxu0 0.0
    %364 = vmatprep.subr.mxu0 0.0
    %365 = vmatpush1.msra.mxu0 0.0
    %366 = vmatprep.subr.mxu0 0.0
    %367 = vmatpush1.msra.mxu0 0.0
    %368 = vmatprep.subr.mxu0 0.0
    %369 = vmatpush1.msra.mxu0 0.0
    %370 = vmatprep.subr.mxu0 0.0
    %371 = vmatpush1.msra.mxu0 0.0
    %372 = vmatprep.subr.mxu0 0.0
    %373 = vmatpush1.msra.mxu0 0.0
    %374 = vmatprep.subr.mxu0 0.0
    %375 = vmatpush1.msra.mxu0 0.0
    %376 = vmatprep.subr.mxu0 0.0
    %377 = vmatpush1.msra.mxu0 0.0
    %378 = vmatprep.subr.mxu0 0.0
    %379 = vmatpush1.msra.mxu0 0.0
    %380 = vmatprep.subr.mxu0 0.0
    %381 = vmatpush1.msra.mxu0 0.0
    %382 = vmatprep.subr.mxu0 0.0
    %383 = vmatpush1.msra.mxu0 0.0
    %384 = vmatprep.subr.mxu0 0.0
    %385 = vmatpush1.msra.mxu0 0.0
    %386 = vmatprep.subr.mxu0 0.0
    %387 = vmatpush1.msra.mxu0 0.0
    %388 = vmatprep.subr.mxu0 0.0
    %389 = vmatpush1.msra.mxu0 0.0
    %390 = vmatprep.subr.mxu0 0.0
    %391 = vmatpush1.msra.mxu0 0.0
    %392 = vmatprep.subr.mxu0 0.0
    %393 = vmatpush1.msra.mxu0 0.0
    %394 = vmatprep.mubr.f32.mxu0 0.0
    %395 = vmatmul.mubr.f32.gmra.mrb[0].mxu0 %v283
    %v396 = vpop.f32.mrb[0].mxu0
    %v397 = vadd.f32 %v279, %v396
    %v398 = vpop.f32.mrb[0].mxu0
    %399 = vmatprep.mubr.f32.mxu0 0.0
    %400 = vmatmul.mubr.f32.gmra.mrb[0].mxu0 %v286
    %v401 = vpop.f32.mrb[0].mxu0
    %v402 = vadd.f32 %v279, %v401
    %v403 = vpop.f32.mrb[0].mxu0
    %404 = vmatprep.mubr.f32.mxu0 0.0
    %405 = vmatmul.mubr.f32.gmra.mrb[0].mxu0 %v289
    %v406 = vpop.f32.mrb[0].mxu0
    %v407 = vadd.f32 %v279, %v406
    %v408 = vpop.f32.mrb[0].mxu0
    %409 = vmatprep.mubr.f32.mxu0 0.0
    %410 = vmatmul.mubr.f32.gmra.mrb[0].mxu0 %v292
    %v411 = vpop.f32.mrb[0].mxu0
    %v412 = vadd.f32 %v279, %v411
    %v413 = vpop.f32.mrb[0].mxu0
    %414 = vmatprep.mubr.f32.mxu0 0.0
    %415 = vmatmul.mubr.f32.gmra.mrb[0].mxu0 %v295
    %v416 = vpop.f32.mrb[0].mxu0
    %v417 = vadd.f32 %v279, %v416
    %v418 = vpop.f32.mrb[0].mxu0
    %419 = vmatprep.mubr.f32.mxu0 0.0
    %420 = vmatmul.mubr.f32.gmra.mrb[0].mxu0 %v298
    %v421 = vpop.f32.mrb[0].mxu0
    %v422 = vadd.f32 %v279, %v421
    %v423 = vpop.f32.mrb[0].mxu0
    %424 = vmatprep.mubr.f32.mxu0 0.0
    %425 = vmatmul.mubr.f32.gmra.mrb[0].mxu0 %v301
    %v426 = vpop.f32.mrb[0].mxu0
    %v427 = vadd.f32 %v279, %v426
    %v428 = vpop.f32.mrb[0].mxu0
    %429 = vmatprep.mubr.f32.mxu0 0.0
    %430 = vmatmul.mubr.f32.gmra.mrb[0].mxu0 %v304
    %v431 = vpop.f32.mrb[0].mxu0
    %v432 = vadd.f32 %v279, %v431
    %v433 = vpop.f32.mrb[0].mxu0
    %434 = vmatprep.mubr.f32.mxu0 0.0
    %435 = vmatmul.mubr.f32.gmra.mrb[0].mxu0 %v307
    %v436 = vpop.f32.mrb[0].mxu0
    %v437 = vadd.f32 %v279, %v436
    %v438 = vpop.f32.mrb[0].mxu0
    %439 = vmatprep.mubr.f32.mxu0 0.0
    %440 = vmatmul.mubr.f32.gmra.mrb[0].mxu0 %v310
    %v441 = vpop.f32.mrb[0].mxu0
    %v442 = vadd.f32 %v279, %v441
    %v443 = vpop.f32.mrb[0].mxu0
    %444 = vmatprep.mubr.f32.mxu0 0.0
    %445 = vmatmul.mubr.f32.gmra.mrb[0].mxu0 %v313
    %v446 = vpop.f32.mrb[0].mxu0
    %v447 = vadd.f32 %v279, %v446
    %v448 = vpop.f32.mrb[0].mxu0
    %449 = vmatprep.mubr.f32.mxu0 0.0
    %450 = vmatmul.mubr.f32.gmra.mrb[0].mxu0 %v316
    %v451 = vpop.f32.mrb[0].mxu0
    %v452 = vadd.f32 %v279, %v451
    %v453 = vpop.f32.mrb[0].mxu0
    %454 = vmatprep.mubr.f32.mxu0 0.0
    %455 = vmatmul.mubr.f32.gmra.mrb[0].mxu0 %v319
    %v456 = vpop.f32.mrb[0].mxu0
    %v457 = vadd.f32 %v279, %v456
    %v458 = vpop.f32.mrb[0].mxu0
    %459 = vmatprep.mubr.f32.mxu0 0.0
    %460 = vmatmul.mubr.f32.gmra.mrb[0].mxu0 %v322
    %v461 = vpop.f32.mrb[0].mxu0
    %v462 = vadd.f32 %v279, %v461
    %v463 = vpop.f32.mrb[0].mxu0
    %464 = vmatprep.mubr.f32.mxu0 0.0
    %465 = vmatmul.mubr.f32.gmra.mrb[0].mxu0 %v325
    %v466 = vpop.f32.mrb[0].mxu0
    %v467 = vadd.f32 %v279, %v466
    %v468 = vpop.f32.mrb[0].mxu0
    %469 = vmatprep.mubr.f32.mxu0 0.0
    %470 = vmatmul.mubr.f32.gmra.mrb[0].mxu0 %v328
    %v471 = vpop.f32.mrb[0].mxu0
    %v472 = vadd.f32 %v279, %v471
    %v473 = vpop.f32.mrb[0].mxu0
    %474 = vdwg.mxu0
    %v475 = vmax.f32 %v397, 0.0
    %v476 = vmax.f32 %v402, 0.0
    %v477 = vmax.f32 %v407, 0.0
    %v478 = vmax.f32 %v412, 0.0
    %v479 = vmax.f32 %v417, 0.0
    %v480 = vmax.f32 %v422, 0.0
    %v481 = vmax.f32 %v427, 0.0
    %v482 = vmax.f32 %v432, 0.0
    %v483 = vmax.f32 %v437, 0.0
    %v484 = vmax.f32 %v442, 0.0
    %v485 = vmax.f32 %v447, 0.0
    %v486 = vmax.f32 %v452, 0.0
    %v487 = vmax.f32 %v457, 0.0
    %v488 = vmax.f32 %v462, 0.0
    %v489 = vmax.f32 %v467, 0.0
    %v490 = vmax.f32 %v472, 0.0
    %v491 = vld [vmem:[%s5] sm:$0xff]
    %v492 = vld [vmem:[%s5 + $0x8] sm:$0xff]
    %v493 = vld [vmem:[%s5 + $0x10] sm:$0xff]
    %v494 = vld [vmem:[%s5 + $0x18] sm:$0xff]
    %v495 = vld [vmem:[%s6] sm:$0x1]
    %v497 = vlaneseq
    %v498 = vshrl.u32 %v497, 7
    %v499 = vsub.s32 0, %v498
    %v500 = vrot.slane %v495, %v499
    %v503 = vsel %vm281, %v475, 0
    %v506 = vsel %vm281, %v476, 0
    %v509 = vsel %vm281, %v477, 0
    %v512 = vsel %vm281, %v478, 0
    %v515 = vsel %vm281, %v479, 0
    %v518 = vsel %vm281, %v480, 0
    %v521 = vsel %vm281, %v481, 0
    %v524 = vsel %vm281, %v482, 0
    %v527 = vsel %vm281, %v483, 0
    %v530 = vsel %vm281, %v484, 0
    %v533 = vsel %vm281, %v485, 0
    %v536 = vsel %vm281, %v486, 0
    %v539 = vsel %vm281, %v487, 0
    %v542 = vsel %vm281, %v488, 0
    %v545 = vsel %vm281, %v489, 0
    %v548 = vsel %vm281, %v490, 0
    %550 = vmatprep.subr.mxu0 0.0
    %551 = vmatpush1.msra.mxu0 %v491
    %552 = vmatprep.subr.mxu0 0.0
    %553 = vmatpush1.msra.mxu0 %v492
    %554 = vmatprep.subr.mxu0 0.0
    %555 = vmatpush1.msra.mxu0 %v493
    %556 = vmatprep.subr.mxu0 0.0
    %557 = vmatpush1.msra.mxu0 %v494
    %558 = vmatprep.subr.mxu0 0.0
    %559 = vmatpush1.msra.mxu0 0.0
    %560 = vmatprep.subr.mxu0 0.0
    %561 = vmatpush1.msra.mxu0 0.0
    %562 = vmatprep.subr.mxu0 0.0
    %563 = vmatpush1.msra.mxu0 0.0
    %564 = vmatprep.subr.mxu0 0.0
    %565 = vmatpush1.msra.mxu0 0.0
    %566 = vmatprep.subr.mxu0 0.0
    %567 = vmatpush1.msra.mxu0 0.0
    %568 = vmatprep.subr.mxu0 0.0
    %569 = vmatpush1.msra.mxu0 0.0
    %570 = vmatprep.subr.mxu0 0.0
    %571 = vmatpush1.msra.mxu0 0.0
    %572 = vmatprep.subr.mxu0 0.0
    %573 = vmatpush1.msra.mxu0 0.0
    %574 = vmatprep.subr.mxu0 0.0
    %575 = vmatpush1.msra.mxu0 0.0
    %576 = vmatprep.subr.mxu0 0.0
    %577 = vmatpush1.msra.mxu0 0.0
    %578 = vmatprep.subr.mxu0 0.0
    %579 = vmatpush1.msra.mxu0 0.0
    %580 = vmatprep.subr.mxu0 0.0
    %581 = vmatpush1.msra.mxu0 0.0
    %582 = vmatprep.subr.mxu0 0.0
    %583 = vmatpush1.msra.mxu0 0.0
    %584 = vmatprep.subr.mxu0 0.0
    %585 = vmatpush1.msra.mxu0 0.0
    %586 = vmatprep.subr.mxu0 0.0
    %587 = vmatpush1.msra.mxu0 0.0
    %588 = vmatprep.subr.mxu0 0.0
    %589 = vmatpush1.msra.mxu0 0.0
    %590 = vmatprep.subr.mxu0 0.0
    %591 = vmatpush1.msra.mxu0 0.0
    %592 = vmatprep.subr.mxu0 0.0
    %593 = vmatpush1.msra.mxu0 0.0
    %594 = vmatprep.subr.mxu0 0.0
    %595 = vmatpush1.msra.mxu0 0.0
    %596 = vmatprep.subr.mxu0 0.0
    %597 = vmatpush1.msra.mxu0 0.0
    %598 = vmatprep.subr.mxu0 0.0
    %599 = vmatpush1.msra.mxu0 0.0
    %600 = vmatprep.subr.mxu0 0.0
    %601 = vmatpush1.msra.mxu0 0.0
    %602 = vmatprep.subr.mxu0 0.0
    %603 = vmatpush1.msra.mxu0 0.0
    %604 = vmatprep.subr.mxu0 0.0
    %605 = vmatpush1.msra.mxu0 0.0
    %606 = vmatprep.subr.mxu0 0.0
    %607 = vmatpush1.msra.mxu0 0.0
    %608 = vmatprep.subr.mxu0 0.0
    %609 = vmatpush1.msra.mxu0 0.0
    %610 = vmatprep.subr.mxu0 0.0
    %611 = vmatpush1.msra.mxu0 0.0
    %612 = vmatprep.subr.mxu0 0.0
    %613 = vmatpush1.msra.mxu0 0.0
    %614 = vmatprep.mubr.f32.mxu0 0.0
    %615 = vmatmul.mubr.f32.gmra.mrb[0].mxu0 %v503
    %v616 = vpop.f32.mrb[0].mxu0
    %v617 = vadd.f32 %v500, %v616
    %v618 = vpop.f32.mrb[0].mxu0
    %619 = vmatprep.mubr.f32.mxu0 0.0
    %620 = vmatmul.mubr.f32.gmra.mrb[0].mxu0 %v506
    %v621 = vpop.f32.mrb[0].mxu0
    %v622 = vadd.f32 %v500, %v621
    %v623 = vpop.f32.mrb[0].mxu0
    %624 = vmatprep.mubr.f32.mxu0 0.0
    %625 = vmatmul.mubr.f32.gmra.mrb[0].mxu0 %v509
    %v626 = vpop.f32.mrb[0].mxu0
    %v627 = vadd.f32 %v500, %v626
    %v628 = vpop.f32.mrb[0].mxu0
    %629 = vmatprep.mubr.f32.mxu0 0.0
    %630 = vmatmul.mubr.f32.gmra.mrb[0].mxu0 %v512
    %v631 = vpop.f32.mrb[0].mxu0
    %v632 = vadd.f32 %v500, %v631
    %v633 = vpop.f32.mrb[0].mxu0
    %634 = vmatprep.mubr.f32.mxu0 0.0
    %635 = vmatmul.mubr.f32.gmra.mrb[0].mxu0 %v515
    %v636 = vpop.f32.mrb[0].mxu0
    %v637 = vadd.f32 %v500, %v636
    %v638 = vpop.f32.mrb[0].mxu0
    %639 = vmatprep.mubr.f32.mxu0 0.0
    %640 = vmatmul.mubr.f32.gmra.mrb[0].mxu0 %v518
    %v641 = vpop.f32.mrb[0].mxu0
    %v642 = vadd.f32 %v500, %v641
    %v643 = vpop.f32.mrb[0].mxu0
    %644 = vmatprep.mubr.f32.mxu0 0.0
    %645 = vmatmul.mubr.f32.gmra.mrb[0].mxu0 %v521
    %v646 = vpop.f32.mrb[0].mxu0
    %v647 = vadd.f32 %v500, %v646
    %v648 = vpop.f32.mrb[0].mxu0
    %649 = vmatprep.mubr.f32.mxu0 0.0
    %650 = vmatmul.mubr.f32.gmra.mrb[0].mxu0 %v524
    %v651 = vpop.f32.mrb[0].mxu0
    %v652 = vadd.f32 %v500, %v651
    %v653 = vpop.f32.mrb[0].mxu0
    %654 = vmatprep.mubr.f32.mxu0 0.0
    %655 = vmatmul.mubr.f32.gmra.mrb[0].mxu0 %v527
    %v656 = vpop.f32.mrb[0].mxu0
    %v657 = vadd.f32 %v500, %v656
    %v658 = vpop.f32.mrb[0].mxu0
    %659 = vmatprep.mubr.f32.mxu0 0.0
    %660 = vmatmul.mubr.f32.gmra.mrb[0].mxu0 %v530
    %v661 = vpop.f32.mrb[0].mxu0
    %v662 = vadd.f32 %v500, %v661
    %v663 = vpop.f32.mrb[0].mxu0
    %664 = vmatprep.mubr.f32.mxu0 0.0
    %665 = vmatmul.mubr.f32.gmra.mrb[0].mxu0 %v533
    %v666 = vpop.f32.mrb[0].mxu0
    %v667 = vadd.f32 %v500, %v666
    %v668 = vpop.f32.mrb[0].mxu0
    %669 = vmatprep.mubr.f32.mxu0 0.0
    %670 = vmatmul.mubr.f32.gmra.mrb[0].mxu0 %v536
    %v671 = vpop.f32.mrb[0].mxu0
    %v672 = vadd.f32 %v500, %v671
    %v673 = vpop.f32.mrb[0].mxu0
    %674 = vmatprep.mubr.f32.mxu0 0.0
    %675 = vmatmul.mubr.f32.gmra.mrb[0].mxu0 %v539
    %v676 = vpop.f32.mrb[0].mxu0
    %v677 = vadd.f32 %v500, %v676
    %v678 = vpop.f32.mrb[0].mxu0
    %679 = vmatprep.mubr.f32.mxu0 0.0
    %680 = vmatmul.mubr.f32.gmra.mrb[0].mxu0 %v542
    %v681 = vpop.f32.mrb[0].mxu0
    %v682 = vadd.f32 %v500, %v681
    %v683 = vpop.f32.mrb[0].mxu0
    %684 = vmatprep.mubr.f32.mxu0 0.0
    %685 = vmatmul.mubr.f32.gmra.mrb[0].mxu0 %v545
    %v686 = vpop.f32.mrb[0].mxu0
    %v687 = vadd.f32 %v500, %v686
    %v688 = vpop.f32.mrb[0].mxu0
    %689 = vmatprep.mubr.f32.mxu0 0.0
    %690 = vmatmul.mubr.f32.gmra.mrb[0].mxu0 %v548
    %v691 = vpop.f32.mrb[0].mxu0
    %v692 = vadd.f32 %v500, %v691
    %v693 = vpop.f32.mrb[0].mxu0
    %694 = vdwg.mxu0
    %v695 = vmax.f32 %v617, 0.0
    %v696 = vmax.f32 %v622, 0.0
    %v697 = vmax.f32 %v627, 0.0
    %v698 = vmax.f32 %v632, 0.0
    %v699 = vmax.f32 %v637, 0.0
    %v700 = vmax.f32 %v642, 0.0
    %v701 = vmax.f32 %v647, 0.0
    %v702 = vmax.f32 %v652, 0.0
    %v703 = vmax.f32 %v657, 0.0
    %v704 = vmax.f32 %v662, 0.0
    %v705 = vmax.f32 %v667, 0.0
    %v706 = vmax.f32 %v672, 0.0
    %v707 = vmax.f32 %v677, 0.0
    %v708 = vmax.f32 %v682, 0.0
    %v709 = vmax.f32 %v687, 0.0
    %v710 = vmax.f32 %v692, 0.0
    %v711 = vld [vmem:[%s7] sm:$0x1]
    %v712 = vld [vmem:[#allocation2] sm:$0x1]
    %714 = vset.pattern.permute.xlu0 0
    %715 = vperm.xlu0 %714, %v712
    %v716 = vpop.permute.xlu0 %715
    %v718 = vlaneseq
    %v719 = vshrl.u32 %v718, 7
    %v720 = vsub.s32 0, %v719
    %v721 = vrot.slane %v716, %v720
    %v723 = vsel %vm281, %v711, 0
    %v726 = vsel %vm281, %v695, 0
    %v729 = vsel %vm281, %v696, 0
    %v732 = vsel %vm281, %v697, 0
    %v735 = vsel %vm281, %v698, 0
    %v738 = vsel %vm281, %v699, 0
    %v741 = vsel %vm281, %v700, 0
    %v744 = vsel %vm281, %v701, 0
    %v747 = vsel %vm281, %v702, 0
    %v750 = vsel %vm281, %v703, 0
    %v753 = vsel %vm281, %v704, 0
    %v756 = vsel %vm281, %v705, 0
    %v759 = vsel %vm281, %v706, 0
    %v762 = vsel %vm281, %v707, 0
    %v765 = vsel %vm281, %v708, 0
    %v768 = vsel %vm281, %v709, 0
    %v771 = vsel %vm281, %v710, 0
    %773 = vmatprep.subr.mxu0 0.0
    %774 = vmatpush1.xpose.msra.mxu0 %v726
    %775 = vmatprep.subr.mxu0 0.0
    %776 = vmatpush1.xpose.msra.mxu0 %v729
    %777 = vmatprep.subr.mxu0 0.0
    %778 = vmatpush1.xpose.msra.mxu0 %v732
    %779 = vmatprep.subr.mxu0 0.0
    %780 = vmatpush1.xpose.msra.mxu0 %v735
    %781 = vmatprep.subr.mxu0 0.0
    %782 = vmatpush1.xpose.msra.mxu0 %v738
    %783 = vmatprep.subr.mxu0 0.0
    %784 = vmatpush1.xpose.msra.mxu0 %v741
    %785 = vmatprep.subr.mxu0 0.0
    %786 = vmatpush1.xpose.msra.mxu0 %v744
    %787 = vmatprep.subr.mxu0 0.0
    %788 = vmatpush1.xpose.msra.mxu0 %v747
    %789 = vmatprep.subr.mxu0 0.0
    %790 = vmatpush1.xpose.msra.mxu0 %v750
    %791 = vmatprep.subr.mxu0 0.0
    %792 = vmatpush1.xpose.msra.mxu0 %v753
    %793 = vmatprep.subr.mxu0 0.0
    %794 = vmatpush1.xpose.msra.mxu0 %v756
    %795 = vmatprep.subr.mxu0 0.0
    %796 = vmatpush1.xpose.msra.mxu0 %v759
    %797 = vmatprep.subr.mxu0 0.0
    %798 = vmatpush1.xpose.msra.mxu0 %v762
    %799 = vmatprep.subr.mxu0 0.0
    %800 = vmatpush1.xpose.msra.mxu0 %v765
    %801 = vmatprep.subr.mxu0 0.0
    %802 = vmatpush1.xpose.msra.mxu0 %v768
    %803 = vmatprep.subr.mxu0 0.0
    %804 = vmatpush1.xpose.msra.mxu0 %v771
    %805 = vmatprep.subr.mxu0 0.0
    %806 = vmatpush1.xpose.msra.mxu0 0.0
    %807 = vmatprep.subr.mxu0 0.0
    %808 = vmatpush1.xpose.msra.mxu0 0.0
    %809 = vmatprep.subr.mxu0 0.0
    %810 = vmatpush1.xpose.msra.mxu0 0.0
    %811 = vmatprep.subr.mxu0 0.0
    %812 = vmatpush1.xpose.msra.mxu0 0.0
    %813 = vmatprep.subr.mxu0 0.0
    %814 = vmatpush1.xpose.msra.mxu0 0.0
    %815 = vmatprep.subr.mxu0 0.0
    %816 = vmatpush1.xpose.msra.mxu0 0.0
    %817 = vmatprep.subr.mxu0 0.0
    %818 = vmatpush1.xpose.msra.mxu0 0.0
    %819 = vmatprep.subr.mxu0 0.0
    %820 = vmatpush1.xpose.msra.mxu0 0.0
    %821 = vmatprep.subr.mxu0 0.0
    %822 = vmatpush1.xpose.msra.mxu0 0.0
    %823 = vmatprep.subr.mxu0 0.0
    %824 = vmatpush1.xpose.msra.mxu0 0.0
    %825 = vmatprep.subr.mxu0 0.0
    %826 = vmatpush1.xpose.msra.mxu0 0.0
    %827 = vmatprep.subr.mxu0 0.0
    %828 = vmatpush1.xpose.msra.mxu0 0.0
    %829 = vmatprep.subr.mxu0 0.0
    %830 = vmatpush1.xpose.msra.mxu0 0.0
    %831 = vmatprep.subr.mxu0 0.0
    %832 = vmatpush1.xpose.msra.mxu0 0.0
    %833 = vmatprep.subr.mxu0 0.0
    %834 = vmatpush1.xpose.msra.mxu0 0.0
    %835 = vmatprep.subr.mxu0 0.0
    %836 = vmatpush1.xpose.msra.mxu0 0.0
    %837 = vmatprep.mubr.f32.mxu0 0.0
    %838 = vmatmul.mubr.f32.gmra.mrb[0].mxu0 %v723
    %v839 = vpop.f32.mrb[0].mxu0
    %v840 = vadd.f32 %v721, %v839
    %v841 = vpop.f32.mrb[0].mxu0
    %842 = vdwg.mxu0
    %v843 = vmul.f32 %v840, 0.5
    %844 = vst [vmem:[#allocation3] sm:$0x1] %v843
    // Predicated region
    $region38: #{tpu_custom_call.1} parent=1 // pred_check
      _
    $region39: #{tpu_custom_call.1} parent=1 // pred_check_branch
      %846 = sbr.rel (0) target = $region41
    $region40: #{tpu_custom_call.1} parent=1 // pred_region
      %s848 = ssub.s32 16, 16
      %849 = vsyncadd [#allocation4], %s848
      %s851 = sshll.u32 [#allocation3], 4
      %s852 = int_to_ptr.vmem [resolvable:$true] %s851
      %854 = dma.vmem_to_hbm [thread:$0]  %s852, 16, %s9, [#allocation4]
    $region41: #{tpu_custom_call.1} parent=1 // pred_fallthru
      _
    // Predicated region
    $region42: #{tpu_custom_call.1} parent=1 // pred_check
      _
    $region43: #{tpu_custom_call.1} parent=1 // pred_check_branch
      %856 = sbr.rel (0) target = $region45
    $region44: #{tpu_custom_call.1} parent=1 // pred_region
      %857 = dma.done [#allocation4], 16
    $region45: #{tpu_custom_call.1} parent=1 // pred_fallthru
      _
    %858 = vsyncpa [#allocation4], 1

</llo_original>
